<compile_context>
chip_gen: v5e
topology: v5e:2x2
jax: 0.10.0
libtpu: 0.0.40
codegen_flags: <defaults>
</compile_context>

<pallas_src>
import functools

import jax
import jax.numpy as jnp
import numpy as np
from jax import lax
from jax.experimental import pallas as pl
from jax.experimental.pallas import tpu as pltpu

EPS = 1e-8  # PyTorch CosineSimilarity default eps


def _full_match_kernel(v1_ref, mask_ref, v2_ref, w2_ref, out_ref, *, attn):
    v1 = v1_ref[0]          # (TR, H)
    mask = mask_ref[0]      # (TR, 1)
    w2 = w2_ref[...]        # (L, H) == w*w, precomputed in the wrapper
    rows = v1.shape[0]

    a = v1 * mask           # masked v1, (TR, H)

    # Contract H on both operands -> (L, rows): output lane dim = rows (dense).
    dn = (((1,), (1,)), ((), ()))

    if attn:
        v2 = v2_ref[0]      # (TR, H)  per-timestep v2
        p = jnp.concatenate([a * v2, a * a, v2 * v2], axis=0)          # (3*TR, H)
        d = lax.dot_general(w2, p, dn, preferred_element_type=jnp.float32)  # (L, 3*TR)
        num = d[:, :rows]
        d1 = d[:, rows:2 * rows]
        d2 = d[:, 2 * rows:]
    else:
        v2 = v2_ref[0]      # (1, H)  last state, broadcast over rows in VMEM
        p = jnp.concatenate([a * v2, a * a], axis=0)                   # (2*TR, H)
        d = lax.dot_general(w2, p, dn, preferred_element_type=jnp.float32)  # (L, 2*TR)
        num = d[:, :rows]
        d1 = d[:, rows:]
        d2 = lax.dot_general(w2, v2 * v2, dn,
                             preferred_element_type=jnp.float32)       # (L, 1)

    # max(sqrt(x), eps) == sqrt(max(x, eps^2)); rsqrt runs on the (idle) EUP slot.
    inv1 = lax.rsqrt(jnp.maximum(d1, EPS * EPS))
    inv2 = lax.rsqrt(jnp.maximum(d2, EPS * EPS))
    out_ref[0] = (num * inv1 * inv2).astype(out_ref.dtype)             # (L, TR)


@functools.partial(jax.jit, static_argnames=("attn",))
def full_match(v1, v1_mask, v2, w, attn=False):
    """Pallas implementation of FullMatch.forward.

    v1: (B, T, H); v1_mask: (B, T); v2: (B, H) if attn=False else (B, T, H);
    w: (L, H). Returns (B, T, L) float32.
    """
    B, T, H = v1.shape
    L = w.shape[0]

    # Row tile over time: full T when small, else 512 (multiple of 8 sublanes
    # for the inputs and of 128 lanes for the transposed output block).
    TR = T if T <= 512 else 512
    nR = pl.cdiv(T, TR)

    mask3 = v1_mask[..., None].astype(v1.dtype)   # (B, T, 1)
    w_sq = (w * w).astype(v1.dtype)               # (L, H), computed once outside

    if attn:
        v2_in = v2                                # (B, T, H)
        v2_spec = pl.BlockSpec((1, TR, H), lambda b, r: (b, r, 0))
    else:
        v2_in = v2[:, None, :]                    # (B, 1, H) -- NOT broadcast in HBM
        v2_spec = pl.BlockSpec((1, 1, H), lambda b, r: (b, 0, 0))

    grid_spec = pltpu.PrefetchScalarGridSpec(
        num_scalar_prefetch=0,
        grid=(B, nR),
        in_specs=[
            pl.BlockSpec((1, TR, H), lambda b, r: (b, r, 0)),   # v1
            pl.BlockSpec((1, TR, 1), lambda b, r: (b, r, 0)),   # mask
            v2_spec,                                            # v2
            pl.BlockSpec((L, H), lambda b, r: (0, 0)),          # w**2 (resident)
        ],
        out_specs=pl.BlockSpec((1, L, TR), lambda b, r: (b, 0, r)),
    )

    out_t = pl.pallas_call(
        functools.partial(_full_match_kernel, attn=attn),
        out_shape=jax.ShapeDtypeStruct((B, L, T), jnp.float32),
        grid_spec=grid_spec,
        compiler_params=pltpu.CompilerParams(
            dimension_semantics=("parallel", "parallel")),
    )(v1, mask3, v2_in, w_sq)

    # Kernel stores a lane-dense (B, L, T) slab; present the module's (B, T, L).
    return jnp.transpose(out_t, (0, 2, 1))


def _reference(v1, v1_mask, v2, w, attn=False):
    """Pure-JAX transcription of the PyTorch forward (for verification)."""
    v1 = v1 * v1_mask[..., None]                          # (B,T,H)
    if not attn:
        v2 = jnp.broadcast_to(v2[:, None, :], v1.shape)   # (B,T,H)
    w_b = jnp.transpose(w)[None, None, :, :]              # (1,1,H,L)
    v1s = w_b * v1[..., None]                             # (B,T,H,L)
    v2s = w_b * v2[..., None]                             # (B,T,H,L)
    num = jnp.sum(v1s * v2s, axis=2)
    n1 = jnp.maximum(jnp.linalg.norm(v1s, axis=2), EPS)
    n2 = jnp.maximum(jnp.linalg.norm(v2s, axis=2), EPS)
    return num / (n1 * n2)                                # (B,T,L)


if __name__ == "__main__":
    # hparams: num_perspective = 4, hidden = 32; batch = 2, seq = 8
    B, T, H, L = 2, 8, 32, 4
    key = jax.random.PRNGKey(0)
    k1, k2, k3 = jax.random.split(key, 3)

    v1 = jax.random.normal(k1, (B, T, H), dtype=jnp.float32)
    v2_last = jax.random.normal(k2, (B, H), dtype=jnp.float32)
    # mask: last two timesteps of batch 1 are padding
    v1_mask = jnp.ones((B, T), dtype=jnp.float32).at[1, -2:].set(0.0)
    # deterministic "parameter" w (num_perspective, hidden)
    w = jax.random.normal(k3, (L, H), dtype=jnp.float32) * 0.1

    # attn=False path (v2 is the final state of the other sentence)
    out = full_match(v1, v1_mask, v2_last, w, attn=False)
    out = jax.block_until_ready(out)
    ref = _reference(v1, v1_mask, v2_last, w, attn=False)
    assert out.shape == (B, T, L)
    np.testing.assert_allclose(np.asarray(out), np.asarray(ref),
                               rtol=2e-5, atol=2e-5)

    # attn=True path (v2 already per-timestep)
    v2_seq = jax.random.normal(jax.random.PRNGKey(7), (B, T, H),
                               dtype=jnp.float32)
    out2 = jax.block_until_ready(full_match(v1, v1_mask, v2_seq, w, attn=True))
    ref2 = _reference(v1, v1_mask, v2_seq, w, attn=True)
    np.testing.assert_allclose(np.asarray(out2), np.asarray(ref2),
                               rtol=2e-5, atol=2e-5)

    print("KERNEL_OK")
</pallas_src>

<mosaic_0001>
module attributes {stable_mosaic.version = 11 : i64} {
  func.func @_full_match_kernel(%arg0: i32, %arg1: i32, %arg2: memref<1x8x32xf32, #tpu.memory_space<vmem>>, %arg3: memref<1x8x1xf32, #tpu.memory_space<vmem>>, %arg4: memref<1x1x32xf32, #tpu.memory_space<vmem>>, %arg5: memref<4x32xf32, #tpu.memory_space<vmem>>, %arg6: memref<1x4x8xf32, #tpu.memory_space<vmem>>) attributes {dimension_semantics = [#tpu.dimension_semantics<parallel>, #tpu.dimension_semantics<parallel>], iteration_bounds = array<i64: 2, 1>, scalar_prefetch = 0 : i64, scratch_operands = 0 : i64, tpu.core_type = #tpu.core_type<tc>, window_params = [{transform_indices = @transform_0, window_bounds = array<i64: 1, 8, 32>}, {transform_indices = @transform_1, window_bounds = array<i64: 1, 8, 1>}, {transform_indices = @transform_2, window_bounds = array<i64: 1, 1, 32>}, {pipeline_mode = #tpu.pipeline_mode<synchronous>, transform_indices = @transform_3, window_bounds = array<i64: 4, 32>}, {transform_indices = @transform_4, window_bounds = array<i64: 1, 4, 8>}]} {
    %c0 = arith.constant 0 : index
    %c0_0 = arith.constant 0 : index
    %c0_1 = arith.constant 0 : index
    %0 = vector.load %arg2[%c0, %c0_0, %c0_1] : memref<1x8x32xf32, #tpu.memory_space<vmem>>, vector<1x8x32xf32>
    %1 = vector.shape_cast %0 : vector<1x8x32xf32> to vector<8x32xf32>
    %c0_2 = arith.constant 0 : index
    %c0_3 = arith.constant 0 : index
    %c0_4 = arith.constant 0 : index
    %2 = vector.load %arg3[%c0_2, %c0_3, %c0_4] : memref<1x8x1xf32, #tpu.memory_space<vmem>>, vector<1x8x1xf32>
    %3 = vector.shape_cast %2 : vector<1x8x1xf32> to vector<8x1xf32>
    %c0_5 = arith.constant 0 : index
    %c0_6 = arith.constant 0 : index
    %4 = vector.load %arg5[%c0_5, %c0_6] : memref<4x32xf32, #tpu.memory_space<vmem>>, vector<4x32xf32>
    %5 = vector.broadcast %3 : vector<8x1xf32> to vector<8x32xf32>
    %6 = arith.mulf %1, %5 : vector<8x32xf32>
    %c0_7 = arith.constant 0 : index
    %c0_8 = arith.constant 0 : index
    %c0_9 = arith.constant 0 : index
    %7 = vector.load %arg4[%c0_7, %c0_8, %c0_9] : memref<1x1x32xf32, #tpu.memory_space<vmem>>, vector<1x1x32xf32>
    %8 = vector.shape_cast %7 : vector<1x1x32xf32> to vector<1x32xf32>
    %9 = vector.broadcast %8 : vector<1x32xf32> to vector<8x32xf32>
    %10 = arith.mulf %6, %9 : vector<8x32xf32>
    %11 = arith.mulf %6, %6 : vector<8x32xf32>
    %12 = tpu.concatenate %10, %11 in 0 : vector<8x32xf32>, vector<8x32xf32> -> vector<16x32xf32>
    %cst = arith.constant dense<0.000000e+00> : vector<4x16xf32>
    %13 = tpu.matmul %4, %12, %cst {dimension_numbers = #tpu.dot_dimension_numbers<[1], [1], [0], [0], [0, 0, 1, 0], [], []>} : vector<4x32xf32>, vector<16x32xf32>, vector<4x16xf32> -> vector<4x16xf32>
    %14 = vector.extract_strided_slice %13 {offsets = [0, 0], sizes = [4, 8], strides = [1, 1]} : vector<4x16xf32> to vector<4x8xf32>
    %15 = vector.extract_strided_slice %13 {offsets = [0, 8], sizes = [4, 8], strides = [1, 1]} : vector<4x16xf32> to vector<4x8xf32>
    %16 = arith.mulf %8, %8 : vector<1x32xf32>
    %cst_10 = arith.constant dense<0.000000e+00> : vector<4x1xf32>
    %17 = tpu.matmul %4, %16, %cst_10 {dimension_numbers = #tpu.dot_dimension_numbers<[1], [1], [0], [0], [0, 0, 1, 0], [], []>} : vector<4x32xf32>, vector<1x32xf32>, vector<4x1xf32> -> vector<4x1xf32>
    %cst_11 = arith.constant 1.000000e-16 : f32
    %18 = vector.broadcast %cst_11 : f32 to vector<4x8xf32>
    %19 = arith.maximumf %15, %18 : vector<4x8xf32>
    %20 = math.rsqrt %19 : vector<4x8xf32>
    %cst_12 = arith.constant 1.000000e-16 : f32
    %21 = vector.broadcast %cst_12 : f32 to vector<4x1xf32>
    %22 = arith.maximumf %17, %21 : vector<4x1xf32>
    %23 = math.rsqrt %22 : vector<4x1xf32>
    %24 = arith.mulf %14, %20 : vector<4x8xf32>
    %25 = vector.broadcast %23 : vector<4x1xf32> to vector<4x8xf32>
    %26 = arith.mulf %24, %25 : vector<4x8xf32>
    %c0_13 = arith.constant 0 : index
    %c0_14 = arith.constant 0 : index
    %c0_15 = arith.constant 0 : index
    %27 = vector.load %arg6[%c0_13, %c0_14, %c0_15] : memref<1x4x8xf32, #tpu.memory_space<vmem>>, vector<1x4x8xf32>
    %28 = vector.shape_cast %27 : vector<1x4x8xf32> to vector<4x8xf32>
    %29 = vector.shape_cast %26 : vector<4x8xf32> to vector<1x4x8xf32>
    tpu.vector_store %arg6[%c0_13, %c0_14, %c0_15], %29 {strides = array<i32>} : memref<1x4x8xf32, #tpu.memory_space<vmem>>, vector<1x4x8xf32>,
    return
  }
  func.func @transform_0(%arg0: i32, %arg1: i32) -> (i32, i32, i32) {
    %c0_i32 = arith.constant 0 : i32
    %c0_i32_0 = arith.constant 0 : i32
    return %arg0, %arg1, %c0_i32 : i32, i32, i32
  }
  func.func @transform_1(%arg0: i32, %arg1: i32) -> (i32, i32, i32) {
    %c0_i32 = arith.constant 0 : i32
    %c0_i32_0 = arith.constant 0 : i32
    return %arg0, %arg1, %c0_i32 : i32, i32, i32
  }
  func.func @transform_2(%arg0: i32, %arg1: i32) -> (i32, i32, i32) {
    %c0_i32 = arith.constant 0 : i32
    %c0_i32_0 = arith.constant 0 : i32
    %c0_i32_1 = arith.constant 0 : i32
    return %arg0, %c0_i32, %c0_i32_0 : i32, i32, i32
  }
  func.func @transform_3(%arg0: i32, %arg1: i32) -> (i32, i32) {
    %c0_i32 = arith.constant 0 : i32
    %c0_i32_0 = arith.constant 0 : i32
    %c0_i32_1 = arith.constant 0 : i32
    return %c0_i32, %c0_i32_0 : i32, i32
  }
  func.func @transform_4(%arg0: i32, %arg1: i32) -> (i32, i32, i32) {
    %c0_i32 = arith.constant 0 : i32
    %c0_i32_0 = arith.constant 0 : i32
    return %arg0, %c0_i32, %arg1 : i32, i32, i32
  }
}

</mosaic_0001>

<llo_original>
// kernel: mul.1
$region0: #{mul.1}
  #allocation0 [shape = 's32[1]{0}', space=sflag, size = 0x4, scoped, tag = 'scoped memory for mul.1']
  %s0 = inlined_call_operand.vmem [shape: f32[4,32], index: 0, kind: input, shape index: {}, may-alias: {0,1}]
  %s1 = inlined_call_operand.vmem [shape: f32[4,32], index: 1, kind: input, shape index: {}, may-alias: {0,1}]
  %s2 = inlined_call_operand.vmem [shape: f32[4,32], index: 2, kind: output, shape index: {}]
  %v3 = vld [vmem:[%s0] sm:$0xf]
  %v4 = vld [vmem:[%s1] sm:$0xf]
  %5 = xla_tuple %v3, %v4
  %6 = xla_tuple %5
  %v7 = vmul.f32 %v3, %v4
  %8 = xla_tuple %v7
  %9 = vst [vmem:[%s2] sm:$0xf] %v7

// kernel: full_match.1
$region0: #{full_match.1}
  #allocation0 [shape = 'u32[]', space=smem, size = 0x4, offset = 0x4, fixed_abs, tag = 'smem constant byte address 0x4 - core index']
  #allocation1 [shape = 'u32[72,128]{1,0:T(1,128)}', space=vmem, size = 0x9000, scoped, tag = 'internal scratch']
  %s0 = inlined_call_operand.vmem [shape: f32[2,8,32], index: 0, kind: input, shape index: {}]
  %s1 = inlined_call_operand.vmem [shape: f32[2,8,1], index: 1, kind: input, shape index: {}]
  %s2 = inlined_call_operand.vmem [shape: f32[2,1,32], index: 2, kind: input, shape index: {}]
  %s3 = inlined_call_operand.vmem [shape: f32[4,32], index: 3, kind: input, shape index: {}]
  %s4 = inlined_call_operand.hbm [shape: f32[2,4,8], index: 4, kind: output, shape index: {}]
  %s5 = sld [smem:[#allocation0]]
  $region49: #{full_match.1} parent=0
    _
  %s7 = ssub.s32 1, %s5
  %s8 = scalar_select 0, %s7, %s5
  $region1: #{full_match.1} parent=0
    #allocation2 [shape = 'u8[4096]{0}', space=vmem, size = 0x1000, scoped, tag = 'output window, operand 0']
    #allocation3 [shape = 's32[2]{0}', space=sflag, size = 0x8, scoped, tag = 'scoped memory for full_match.1']
    %9 = vsyncpa [#allocation3], 0
    %s10 = scalar_lea.sflag [#allocation3], 1
    %11 = vsyncpa %s10, 0
    loop: start=0, step=1, limit=4
    $region2: #{full_match.1} parent=1 // loop_pre_header
      _
    $region3: #{full_match.1} parent=1 // loop_header
      %s13 = sphi 0, %s17
      %p14 = scmp.ge.s32.totalorder %s13, 4
      %s20 = sphi 0, %s32
      %s21 = sphi 0, %s28
      %s22 = sphi 0, %s20
      %s23 = sphi 0, %s21
      %s24 = sphi 0, %s22
      %s25 = sphi 0, %s23
      %s37 = sphi 0, %s39
      %s40 = sphi 0, %s37
      %s41 = sphi 0, %s40
      %s57 = sphi 0, %s41
      %s65 = sphi 0, %s67
      %s68 = sphi 0, %s65
      %s69 = sphi 0, %s68
      %s85 = sphi 0, %s69
      %s91 = sphi 0, %s93
      %s94 = sphi 0, %s91
      %s95 = sphi 0, %s94
      %s111 = sphi 0, %s95
      %s115 = sphi 0, %s115
      %s117 = sphi 0, %s115
      %s118 = sphi 0, %s117
      %s132 = sphi 0, %s118
      %s140 = sphi 0, %s142
      %s143 = sphi 0, %s140
      %s144 = sphi 0, %s143
      %s160 = sphi 0, %s144
    $region4: #{full_match.1} parent=1 // loop_header_branch
      %16 = sbr.rel (%p14) target = $region8
    $region5: #{full_match.1} parent=1 // loop_body
      %s18 = ssub.s32 %s13, 1
      %s19 = ssub.s32 %s13, 2
      %s26 = sadd.s32 1, %s21
      %p27 = scmp.ge.s32.totalorder %s26, 1
      %s28 = scalar_select %p27, 0, %s26
      %s29 = sadd.s32 1, %s20
      %s30 = scalar_select %p27, %s29, %s20
      %p31 = scmp.ge.s32.totalorder %s30, 2
      %s32 = scalar_select %p31, 0, %s30
      %s33 = ssub.s32 %s20, %s32
      %s34 = ssub.s32 %s21, %s28
      %s35 = sor.u32 %s33, %s34
      %p36 = scmp.eq.s32.totalorder %s35, 0
      %s38 = sadd.s32 %s37, 1
      %s39 = scalar_select %p36, %s37, %s38
      %p42 = pneg %p36
      %p43 = scmp.eq.s32.totalorder %s13, 1
      %p44 = por %p42, %p43
      %p45 = scmp.ne.s32.totalorder %s37, %s40
      %p46 = scmp.eq.s32.totalorder %s13, 0
      %p47 = por %p45, %p46
      %p48 = scmp.ne.s32.totalorder %s37, %s40
      %p49 = scmp.eq.s32.totalorder %s18, 1
      %p50 = por %p48, %p49
      %p51 = scmp.ne.s32.totalorder %s40, %s41
      %p52 = scmp.eq.s32.totalorder %s18, 0
      %p53 = por %p51, %p52
      %p54 = scmp.ne.s32.totalorder %s40, %s41
      %p55 = scmp.eq.s32.totalorder %s19, 1
      %p56 = por %p54, %p55
      %p58 = scmp.ne.s32.totalorder %s41, %s57
      %p59 = scmp.eq.s32.totalorder %s19, 0
      %p60 = por %p58, %p59
      %s61 = ssub.s32 %s20, %s32
      %s62 = ssub.s32 %s21, %s28
      %s63 = sor.u32 %s61, %s62
      %p64 = scmp.eq.s32.totalorder %s63, 0
      %s66 = sadd.s32 %s65, 1
      %s67 = scalar_select %p64, %s65, %s66
      %p70 = pneg %p64
      %p71 = scmp.eq.s32.totalorder %s13, 1
      %p72 = por %p70, %p71
      %p73 = scmp.ne.s32.totalorder %s65, %s68
      %p74 = scmp.eq.s32.totalorder %s13, 0
      %p75 = por %p73, %p74
      %p76 = scmp.ne.s32.totalorder %s65, %s68
      %p77 = scmp.eq.s32.totalorder %s18, 1
      %p78 = por %p76, %p77
      %p79 = scmp.ne.s32.totalorder %s68, %s69
      %p80 = scmp.eq.s32.totalorder %s18, 0
      %p81 = por %p79, %p80
      %p82 = scmp.ne.s32.totalorder %s68, %s69
      %p83 = scmp.eq.s32.totalorder %s19, 1
      %p84 = por %p82, %p83
      %p86 = scmp.ne.s32.totalorder %s69, %s85
      %p87 = scmp.eq.s32.totalorder %s19, 0
      %p88 = por %p86, %p87
      %s89 = ssub.s32 %s20, %s32
      %p90 = scmp.eq.s32.totalorder %s89, 0
      %s92 = sadd.s32 %s91, 1
      %s93 = scalar_select %p90, %s91, %s92
      %p96 = pneg %p90
      %p97 = scmp.eq.s32.totalorder %s13, 1
      %p98 = por %p96, %p97
      %p99 = scmp.ne.s32.totalorder %s91, %s94
      %p100 = scmp.eq.s32.totalorder %s13, 0
      %p101 = por %p99, %p100
      %p102 = scmp.ne.s32.totalorder %s91, %s94
      %p103 = scmp.eq.s32.totalorder %s18, 1
      %p104 = por %p102, %p103
      %p105 = scmp.ne.s32.totalorder %s94, %s95
      %p106 = scmp.eq.s32.totalorder %s18, 0
      %p107 = por %p105, %p106
      %p108 = scmp.ne.s32.totalorder %s94, %s95
      %p109 = scmp.eq.s32.totalorder %s19, 1
      %p110 = por %p108, %p109
      %p112 = scmp.ne.s32.totalorder %s95, %s111
      %p113 = scmp.eq.s32.totalorder %s19, 0
      %p114 = por %p112, %p113
      %s116 = sadd.s32 %s115, 1
      %p119 = scmp.eq.s32.totalorder %s13, 1
      %p120 = scmp.ne.s32.totalorder %s115, %s117
      %p121 = scmp.eq.s32.totalorder %s13, 0
      %p122 = por %p120, %p121
      %p123 = scmp.ne.s32.totalorder %s115, %s117
      %p124 = scmp.eq.s32.totalorder %s18, 1
      %p125 = por %p123, %p124
      %p126 = scmp.ne.s32.totalorder %s117, %s118
      %p127 = scmp.eq.s32.totalorder %s18, 0
      %p128 = por %p126, %p127
      %p129 = scmp.ne.s32.totalorder %s117, %s118
      %p130 = scmp.eq.s32.totalorder %s19, 1
      %p131 = por %p129, %p130
      %p133 = scmp.ne.s32.totalorder %s118, %s132
      %p134 = scmp.eq.s32.totalorder %s19, 0
      %p135 = por %p133, %p134
      %s136 = ssub.s32 %s20, %s32
      %s137 = ssub.s32 %s21, %s28
      %s138 = sor.u32 %s136, %s137
      %p139 = scmp.eq.s32.totalorder %s138, 0
      %s141 = sadd.s32 %s140, 1
      %s142 = scalar_select %p139, %s140, %s141
      %p145 = pneg %p139
      %p146 = scmp.eq.s32.totalorder %s13, 1
      %p147 = por %p145, %p146
      %p148 = scmp.ne.s32.totalorder %s140, %s143
      %p149 = scmp.eq.s32.totalorder %s13, 0
      %p150 = por %p148, %p149
      %p151 = scmp.ne.s32.totalorder %s140, %s143
      %p152 = scmp.eq.s32.totalorder %s18, 1
      %p153 = por %p151, %p152
      %p154 = scmp.ne.s32.totalorder %s143, %s144
      %p155 = scmp.eq.s32.totalorder %s18, 0
      %p156 = por %p154, %p155
      %p157 = scmp.ne.s32.totalorder %s143, %s144
      %p158 = scmp.eq.s32.totalorder %s19, 1
      %p159 = por %p157, %p158
      %p161 = scmp.ne.s32.totalorder %s144, %s160
      %p162 = scmp.eq.s32.totalorder %s19, 0
      %p163 = por %p161, %p162
      %p164 = scmp.le.s32.totalorder 1, %s13
      %p165 = scmp.lt.s32.totalorder %s13, 3
      %p166 = pnand %p164, %p165
      %p167 = pneg %p166
      // Predicated region
      $region9: #{full_match.1} parent=5 // pred_check
        _
      $region10: #{full_match.1} parent=5 // pred_check_branch
        %169 = sbr.rel (%p166) target = $region12
      $region11: #{full_match.1} parent=5 // pred_region
        %s170 = ssub.s32 %s13, 1
        // Predicated region
        $region13: #{full_match.1} parent=11 // pred_check
          %p171 = pneg %p128
        $region14: #{full_match.1} parent=11 // pred_check_branch
          %173 = sbr.rel (%p171) target = $region16
        $region15: #{full_match.1} parent=11 // pred_region
          _
        $region16: #{full_match.1} parent=11 // pred_fallthru
          _
      $region12: #{full_match.1} parent=5 // pred_fallthru
        _
      %p174 = scmp.lt.s32.totalorder %s13, 2
      // Predicated region
      $region17: #{full_match.1} parent=5 // pred_check
        %p175 = pneg %p174
      $region18: #{full_match.1} parent=5 // pred_check_branch
        %177 = sbr.rel (%p175) target = $region20
      $region19: #{full_match.1} parent=5 // pred_region
        // Predicated region
        $region21: #{full_match.1} parent=19 // pred_check
          %p178 = pneg %p47
        $region22: #{full_match.1} parent=19 // pred_check_branch
          %180 = sbr.rel (%p178) target = $region24
        $region23: #{full_match.1} parent=19 // pred_region
          %p181 = scmp.lt.s32.totalorder %s20, 1
          %s182 = scalar_select %p181, %s20, 1
          %p183 = scmp.lt.s32.totalorder %s21, 0
          %s184 = scalar_select %p183, %s21, 0
          %s185 = sadd.s32 %s184, %s182
          %s186 = smul.addr %s185, 8
          %s187 = scalar_lea.vmem %s0, %s186
        $region24: #{full_match.1} parent=19 // pred_fallthru
          _
        // Predicated region
        $region25: #{full_match.1} parent=19 // pred_check
          %p188 = pneg %p75
        $region26: #{full_match.1} parent=19 // pred_check_branch
          %190 = sbr.rel (%p188) target = $region28
        $region27: #{full_match.1} parent=19 // pred_region
          %p191 = scmp.lt.s32.totalorder %s20, 1
          %s192 = scalar_select %p191, %s20, 1
          %p193 = scmp.lt.s32.totalorder %s21, 0
          %s194 = scalar_select %p193, %s21, 0
          %s195 = sadd.s32 %s194, %s192
          %s196 = smul.addr %s195, 8
          %s197 = scalar_lea.vmem %s1, %s196
        $region28: #{full_match.1} parent=19 // pred_fallthru
          _
        // Predicated region
        $region29: #{full_match.1} parent=19 // pred_check
          %p198 = pneg %p101
        $region30: #{full_match.1} parent=19 // pred_check_branch
          %200 = sbr.rel (%p198) target = $region32
        $region31: #{full_match.1} parent=19 // pred_region
          %p201 = scmp.lt.s32.totalorder %s20, 1
          %s202 = scalar_select %p201, %s20, 1
          %s203 = scalar_lea.vmem %s2, %s202
        $region32: #{full_match.1} parent=19 // pred_fallthru
          _
      $region20: #{full_match.1} parent=5 // pred_fallthru
        _
      %p204 = scmp.le.s32.totalorder 1, %s13
      %p205 = scmp.lt.s32.totalorder %s13, 3
      %p206 = pnand %p204, %p205
      %p207 = pneg %p206
      // Predicated region
      $region33: #{full_match.1} parent=5 // pred_check
        _
      $region34: #{full_match.1} parent=5 // pred_check_branch
        %209 = sbr.rel (%p206) target = $region36
      $region35: #{full_match.1} parent=5 // pred_region
        %s210 = ssub.s32 %s13, 1
        %p211 = scmp.lt.s32.totalorder %s22, 1
        %s212 = scalar_select %p211, %s22, 1
        %p213 = scmp.lt.s32.totalorder %s23, 0
        %s214 = scalar_select %p213, %s23, 0
        %s215 = sadd.s32 %s214, %s212
        %s216 = smul.addr %s215, 8
        %s217 = scalar_lea.vmem %s0, %s216
        %p218 = pneg %p53
        %p219 = pneg %p50
        %p220 = scmp.lt.s32.totalorder %s22, 1
        %s221 = scalar_select %p220, %s22, 1
        %p222 = scmp.lt.s32.totalorder %s23, 0
        %s223 = scalar_select %p222, %s23, 0
        %s224 = sadd.s32 %s223, %s221
        %s225 = smul.addr %s224, 8
        %s226 = scalar_lea.vmem %s1, %s225
        %p227 = pneg %p81
        %p228 = pneg %p78
        %p229 = scmp.lt.s32.totalorder %s22, 1
        %s230 = scalar_select %p229, %s22, 1
        %s231 = scalar_lea.vmem %s2, %s230
        %p232 = pneg %p107
        %p233 = pneg %p104
        %p234 = pneg %p128
        %p235 = pneg %p125
        %p236 = pneg %p156
        %p237 = pneg %p153
        %s238 = sand.u32 %s143, 1
        %s239 = scalar_lea.sflag [#allocation3], %s238
        %s240 = sand.u32 %s143, 1
        %s241 = smul.addr %s240, 4
        %s242 = scalar_lea.vmem [#allocation2], %s241
        %p243 = scmp.lt.s32.totalorder %s22, 1
        %s244 = scalar_select %p243, %s22, 1
        %p245 = scmp.lt.s32.totalorder %s23, 0
        %s246 = scalar_select %p245, %s23, 0
        %s247 = sadd.s32 %s246, %s244
        %s248 = smul.addr %s247, 8
        %s249 = scalar_lea.vmem %s0, %s248
        %p250 = scmp.lt.s32.totalorder %s22, 1
        %s251 = scalar_select %p250, %s22, 1
        %p252 = scmp.lt.s32.totalorder %s23, 0
        %s253 = scalar_select %p252, %s23, 0
        %s254 = sadd.s32 %s253, %s251
        %s255 = smul.addr %s254, 8
        %s256 = scalar_lea.vmem %s1, %s255
        %p257 = scmp.lt.s32.totalorder %s22, 1
        %s258 = scalar_select %p257, %s22, 1
        %s259 = scalar_lea.vmem %s2, %s258
        %v260 = vld [vmem:[%s249] sm:$0xff]
        %v261 = vld [vmem:[%s256] sm:$0xff]
        %v262 = vld [vmem:[%s3] sm:$0xf]
        %264 = vset.pattern.permute.xlu0 0
        %265 = vperm.xlu0 %264, %v261
        %v266 = vpop.permute.xlu0 %265
        %v268 = vmul.f32 %v260, %v266
        %v269 = vld [vmem:[%s259] sm:$0x1]
        %v271 = vperm.slane %v269, 0
        %v273 = vmul.f32 %v268, %v271
        %v274 = vmul.f32 %v268, %v268
        %vm275 = vcmask 261120
        %v277 = vsel %vm275, %v262, 0
        %v280 = vsel %vm275, %v273, 0
        %v283 = vsel %vm275, %v274, 0
        %285 = vmatpush.xpose.msra.mxu0 0.0
        %286 = vmatpush.xpose.msra.mxu0 0.0
        %287 = vmatpush.xpose.msra.mxu0 0.0
        %288 = vmatpush.xpose.msra.mxu0 0.0
        %289 = vmatpush.xpose.msra.mxu0 0.0
        %290 = vmatpush.xpose.msra.mxu0 0.0
        %291 = vmatpush.xpose.msra.mxu0 0.0
        %292 = vmatpush.xpose.msra.mxu0 0.0
        %293 = vmatpush.xpose.msra.mxu0 0.0
        %294 = vmatpush.xpose.msra.mxu0 0.0
        %295 = vmatpush.xpose.msra.mxu0 0.0
        %296 = vmatpush.xpose.msra.mxu0 0.0
        %297 = vmatpush.xpose.msra.mxu0 0.0
        %298 = vmatpush.xpose.msra.mxu0 0.0
        %299 = vmatpush.xpose.msra.mxu0 %v283
        %300 = vmatpush.xpose.msra.mxu0 %v280
        %301 = vmatmul.f32.gmra.mxu0 %v277
        %v302 = vpop.f32.mrf.mxu0
        %v303 = vadd.f32 0.0, %v302
        %304 = vdwg.mxu0
        %v305 = vmul.f32 %v269, %v269
        %v307 = vperm.slane %v305, 0
        %v309 = vmul.f32 %v262, %v307
        %vm310 = vcmask 257024
        %v311 = vsel %vm310, %v309, 0.0
        %312 = vadd.xlane.f32.xlu0 %v311
        %v313 = vpop.xlane.xlu0 %312
        %v314 = vmax.f32 %v303, 1e-16
        %v315 = vrsqrt.pop %v314
        %v316 = vmul.f32 %v315, %v314
        %v317 = vmul.f32 %v316, %v315
        %v318 = vmul.f32 0.5, %v317
        %v319 = vsub.f32 1.5, %v318
        %v320 = vmul.f32 %v315, %v319
        %vm321 = vweird.f32 %v314
        %vm322 = vweird.f32 %v315
        %vm323 = vmor %vm321, %vm322
        %v324 = vsel %vm323, %v315, %v320
        %v325 = vmax.f32 %v313, 1e-16
        %v326 = vrsqrt.pop %v325
        %v327 = vmul.f32 %v326, %v325
        %v328 = vmul.f32 %v327, %v326
        %v329 = vmul.f32 0.5, %v328
        %v330 = vsub.f32 1.5, %v329
        %v331 = vmul.f32 %v326, %v330
        %vm332 = vweird.f32 %v325
        %vm333 = vweird.f32 %v326
        %vm334 = vmor %vm332, %vm333
        %v335 = vsel %vm334, %v326, %v331
        %337 = vrot.lane.b32.xlu0 %v324, 120
        %v338 = vpop.permute.xlu0 %337
        %v340 = vmul.f32 %v303, %v338
        %v341 = vmul.f32 %v340, %v335
        %vm342 = vcmask 60416
        %343 = vst.msk [vmem:[%s242] sm:$0xf] %vm342, %v341
        %s344 = sand.u32 %s143, 1
        %s345 = scalar_lea.sflag [#allocation3], %s344
        %s346 = sand.u32 %s143, 1
        %s347 = smul.addr %s346, 4
        %s348 = scalar_lea.vmem [#allocation2], %s347
        // Predicated region
        $region37: #{full_match.1} parent=35 // pred_check
          %p349 = pneg %p153
        $region38: #{full_match.1} parent=35 // pred_check_branch
          %351 = sbr.rel (%p349) target = $region40
        $region39: #{full_match.1} parent=35 // pred_region
          %353 = vsyncadd %s345, 0
          %s354 = sadd.s32 %s23, %s22
          %s355 = smul.addr %s354, 4
          %s356 = scalar_lea.hbm %s4, %s355
          %s358 = sshll.u32 %s348, 4
          %s359 = int_to_ptr.vmem [resolvable:$true] %s358
          %s360 = sshll.u32 %s356, 4
          %s361 = int_to_ptr.hbm [resolvable:$true] %s360
          %363 = dma.vmem_to_hbm [thread:$0]  %s359, 64, %s361, %s345
        $region40: #{full_match.1} parent=35 // pred_fallthru
          _
      $region36: #{full_match.1} parent=5 // pred_fallthru
        _
      %p364 = scmp.le.s32.totalorder 2, %s13
      // Predicated region
      $region41: #{full_match.1} parent=5 // pred_check
        %p365 = pneg %p364
      $region42: #{full_match.1} parent=5 // pred_check_branch
        %367 = sbr.rel (%p365) target = $region44
      $region43: #{full_match.1} parent=5 // pred_region
        %s368 = ssub.s32 %s13, 2
        // Predicated region
        $region45: #{full_match.1} parent=43 // pred_check
          %p369 = pneg %p159
        $region46: #{full_match.1} parent=43 // pred_check_branch
          %371 = sbr.rel (%p369) target = $region48
        $region47: #{full_match.1} parent=43 // pred_region
          %s372 = sand.u32 %s144, 1
          %s373 = scalar_lea.sflag [#allocation3], %s372
          %s374 = sand.u32 %s144, 1
          %s375 = smul.addr %s374, 4
          %s376 = scalar_lea.vmem [#allocation2], %s375
          %378 = dma.done %s373, 64
        $region48: #{full_match.1} parent=43 // pred_fallthru
          _
      $region44: #{full_match.1} parent=5 // pred_fallthru
        _
    $region6: #{full_match.1} parent=1 // loop_footer
      %s17 = sadd.s32 1, %s13
    $region7: #{full_match.1} parent=1 // loop_footer_branch
      %12 = sbr.rel target = $region3
    $region8: #{full_match.1} parent=1 // loop_exit
      _
    %379 = vsyncpa [#allocation3], 1
    %s380 = scalar_lea.sflag [#allocation3], 1
    %381 = vsyncpa %s380, 1

</llo_original>
